<compile_context>
chip_gen: v7x
topology: tpu7x:2x2x1
jax: 0.10.0
libtpu: 0.0.40
codegen_flags: <defaults>
</compile_context>

<pallas_src>
import jax
import jax.numpy as jnp
from jax.experimental import pallas as pl
from jax.experimental.pallas import tpu as pltpu


def _leaky_relu(x, slope=0.1):
    return jnp.where(x > 0, x, slope * x)


# --------------------------------- kernel ---------------------------------

def residual_block_kernel(x_ref,     # (NB, H, W*Cin)      bf16
                          w1s_ref,   # (3*W*Cin, 2*W*Cout) bf16: conv1 band | shortcut band
                          s1c_ref,   # (1, 2*W*Cout)       f32:  folded BN1 | BN_sc scale
                          b1c_ref,   # (1, 2*W*Cout)       f32:  folded BN1 | BN_sc bias
                          w2b_ref,   # (3*W*Cout, W*Cout)  bf16: conv2 band
                          s2_ref,    # (1, W*Cout)         f32
                          b2_ref,    # (1, W*Cout)         f32
                          out_ref):  # (NB, H, W*Cout)     f32
    NB, H, WCi = x_ref.shape
    WCo = out_ref.shape[-1]
    M = NB * H
    cdt = x_ref.dtype                                         # matmul-operand dtype (bf16)

    # ---- conv1 (3x3) + fused 1x1 shortcut, as ONE matmul ----
    x = x_ref[...]                                            # (NB, H, W*Cin) bf16
    zi = jnp.zeros((NB, 1, WCi), cdt)
    x_up = jnp.concatenate([zi, x[:, :H - 1, :]], axis=1)     # row h-1 (zero at h=0)
    x_dn = jnp.concatenate([x[:, 1:, :], zi], axis=1)         # row h+1 (zero at h=H-1)
    s_in1 = jnp.concatenate([x_up, x, x_dn], axis=-1).reshape(M, 3 * WCi)

    acc1 = jnp.dot(s_in1, w1s_ref[...],
                   preferred_element_type=jnp.float32)        # (M, 2*W*Cout) f32
    z1 = acc1 * s1c_ref[...] + b1c_ref[...]                   # BN1 | BN_shortcut (f32)
    y1 = _leaky_relu(z1[:, :WCo])                             # conv1 act; dropout == id (eval)
    sc = z1[:, WCo:]                                          # shortcut branch, no activation

    # ---- conv2 (3x3) + BN2, as ONE matmul ----
    y1c = y1.astype(cdt)                                      # bf16 feed for the second dot
    y1r = y1c.reshape(NB, H, WCo)
    zo = jnp.zeros((NB, 1, WCo), cdt)
    y_up = jnp.concatenate([zo, y1r[:, :H - 1, :]], axis=1)
    y_dn = jnp.concatenate([y1r[:, 1:, :], zo], axis=1)
    s_in2 = jnp.concatenate([y_up, y1r, y_dn], axis=-1).reshape(M, 3 * WCo)

    acc2 = jnp.dot(s_in2, w2b_ref[...],
                   preferred_element_type=jnp.float32)        # (M, W*Cout) f32
    z2 = acc2 * s2_ref[...] + b2_ref[...]

    out = _leaky_relu(z2 + sc)
    out_ref[...] = out.reshape(NB, H, WCo).astype(out_ref.dtype)


# ---------------------------- wrapper helpers (plain-JAX glue) ----------------------------

def _band_weight(w_hwio, W):
    """Fold the kw taps (and W-edge zero padding) of a 3x3 HWIO weight into a banded
    matrix B (3*W*Cin, W*Cout) so that, with row[h] = x[h].reshape(W*Cin),
        concat(row[h-1], row[h], row[h+1]) @ B == conv3x3_same(x)[h].reshape(W*Cout)."""
    KH, KW, Cin, Cout = w_hwio.shape
    assert (KH, KW) == (3, 3)
    wp = jnp.arange(W)[:, None]            # input column  w'
    wo = jnp.arange(W)[None, :]            # output column w
    kw = wp - wo + 1                       # tap index
    valid = (kw >= 0) & (kw <= 2)
    g = w_hwio[:, jnp.clip(kw, 0, 2)]      # (kh, w', w, ci, co)
    g = jnp.where(valid[None, :, :, None, None], g, 0.0)
    g = jnp.transpose(g, (0, 1, 3, 2, 4))  # (kh, w', ci, w, co)
    return g.reshape(3 * W * Cin, W * Cout)


def _band_weight_1x1(w_io, W):
    """1x1 conv (shortcut) in the same banded layout: center kh tap only, diagonal in w."""
    Cin, Cout = w_io.shape
    center = (jnp.arange(3) == 1).astype(w_io.dtype)                       # kh == 1
    eye_w = (jnp.arange(W)[:, None] == jnp.arange(W)[None, :]).astype(w_io.dtype)
    b = (center[:, None, None, None, None]
         * eye_w[None, :, None, :, None]
         * w_io[None, None, :, None, :])                                   # (kh,w',ci,w,co)
    return b.reshape(3 * W * Cin, W * Cout)


def _pad_channels(Cin, W, lane=128):
    """Smallest Cin' >= Cin (<= 2*Cin) with W*Cin' a multiple of 128 lanes, else Cin."""
    if (W * Cin) % lane == 0:
        return Cin
    c = Cin + 1
    while c <= 2 * Cin:
        if (W * c) % lane == 0:
            return c
        c += 1
    return Cin


def _pick_batch_block(N, H, WCi, WCo, in_itemsize=2, vmem_block_budget=20 << 20):
    """Largest divisor of N whose per-step footprint (double-buffered in/out blocks plus
    the in-kernel concat temporaries, ~8-10x the nominal block bytes) fits the budget.
    NB is never shrunk just to lengthen the grid: on v5e/v6e the grid is a serial loop
    and each extra step costs ~0.35us while starving the MXU's M dimension."""
    per_elem = H * (WCi * (2 * in_itemsize + 3 * in_itemsize)              # x block(x2) + s_in1
                    + WCo * (2 * 4 + 4 * 4 + 4 + 3 * in_itemsize + 2 * 4))  # out(x2), acc1/z1, y1, s_in2, acc2/z2
    max_nb = max(1, int(vmem_block_budget // max(per_elem, 1)))
    candidates = [d for d in range(1, N + 1) if N % d == 0 and d <= max_nb]
    return max(candidates) if candidates else 1


def prepare_residual_block(params, W, *, matmul_dtype=jnp.bfloat16):
    """Precompute banded bf16 weights and folded-BN scale/bias tiles (do this once per
    block; reuse across every forward call)."""
    w1, w2, ws = params["w1"], params["w2"], params["ws"]
    _, _, Cin, Cout = w1.shape
    Cin_p = _pad_channels(Cin, W)
    if Cin_p != Cin:                       # zero-pad input channels -> lane-aligned seams
        w1 = jnp.pad(w1, ((0, 0), (0, 0), (0, Cin_p - Cin), (0, 0)))
        ws = jnp.pad(ws, ((0, Cin_p - Cin), (0, 0)))
    WCo = W * Cout

    w1s = jnp.concatenate([_band_weight(w1, W), _band_weight_1x1(ws, W)],
                          axis=1).astype(matmul_dtype)          # (3*W*Cin_p, 2*W*Cout)
    w2b = _band_weight(w2, W).astype(matmul_dtype)              # (3*W*Cout,  W*Cout)

    tile = lambda v: jnp.tile(v.reshape(-1), W).astype(jnp.float32)
    s1c = jnp.concatenate([tile(params["s1"]), tile(params["ss"])]).reshape(1, 2 * WCo)
    b1c = jnp.concatenate([tile(params["b1"]), tile(params["bs"])]).reshape(1, 2 * WCo)
    s2 = tile(params["s2"]).reshape(1, WCo)
    b2 = tile(params["b2"]).reshape(1, WCo)

    return dict(w1s=w1s, s1c=s1c, b1c=b1c, w2b=w2b, s2=s2, b2=b2,
                W=W, Cin=Cin, Cin_p=Cin_p, Cout=Cout, matmul_dtype=matmul_dtype)


def residual_block_apply(x_flat, prep):
    """Channels-last entry point: x_flat is (N, H, W*Cin_p) in prep['matmul_dtype'];
    returns (N, H, W*Cout) f32.  Use this directly when stacking blocks."""
    N, H, WCi = x_flat.shape
    W, Cout = prep["W"], prep["Cout"]
    WCo = W * Cout
    w1s, s1c, b1c = prep["w1s"], prep["s1c"], prep["b1c"]
    w2b, s2, b2 = prep["w2b"], prep["s2"], prep["b2"]

    weight_bytes = w1s.size * w1s.dtype.itemsize + w2b.size * w2b.dtype.itemsize
    # TODO(synk): H-tiled (1-row halo) fallback for large W/C instead of this gate.
    assert weight_bytes <= (16 << 20), ("banded weights too large for VMEM path", weight_bytes)

    NB = _pick_batch_block(N, H, WCi, WCo, in_itemsize=x_flat.dtype.itemsize)

    def const(shape):
        # Constant across the grid -> single-buffered (no pointless double buffer).
        return pl.BlockSpec(shape, lambda *_: (0,) * len(shape),
                            pipeline_mode=pl.Buffered(1))

    grid_spec = pltpu.PrefetchScalarGridSpec(
        num_scalar_prefetch=0,
        grid=(N // NB,),
        in_specs=[
            pl.BlockSpec((NB, H, WCi), lambda b: (b, 0, 0)),
            const((3 * WCi, 2 * WCo)),    # conv1 | shortcut banded weights
            const((1, 2 * WCo)),          # BN1 | BN_sc scale
            const((1, 2 * WCo)),          # BN1 | BN_sc bias
            const((3 * WCo, WCo)),        # conv2 banded weights
            const((1, WCo)),              # BN2 scale
            const((1, WCo)),              # BN2 bias
        ],
        out_specs=pl.BlockSpec((NB, H, WCo), lambda b: (b, 0, 0)),
    )

    return pl.pallas_call(
        residual_block_kernel,
        out_shape=jax.ShapeDtypeStruct((N, H, WCo), jnp.float32),
        grid_spec=grid_spec,
        compiler_params=pltpu.CompilerParams(
            dimension_semantics=("parallel",),
            vmem_limit_bytes=32 * 1024 * 1024),   # explicit budget (safe on v7x's 64 MiB)
    )(x_flat, w1s, s1c, b1c, w2b, s2, b2)


def residual_block_forward(x_nchw, params):
    """NCHW in / NCHW out adapter (parity with the PyTorch module).
    TODO(synk): when stacking ResidualBlocks keep activations channels-last and call
    residual_block_apply directly; the NCHW<->NHWC transposes here cost ~2x extra HBM
    traffic per block and belong only at the network boundary."""
    N, Cin, H, W = x_nchw.shape
    prep = prepare_residual_block(params, W)
    x = jnp.transpose(x_nchw, (0, 2, 3, 1)).astype(jnp.float32)          # -> NHWC
    if prep["Cin_p"] != Cin:
        x = jnp.pad(x, ((0, 0), (0, 0), (0, 0), (0, prep["Cin_p"] - Cin)))
    x_flat = x.reshape(N, H, W * prep["Cin_p"]).astype(prep["matmul_dtype"])
    out = residual_block_apply(x_flat, prep)                             # (N, H, W*Cout) f32
    out = out.reshape(N, H, W, prep["Cout"])
    return jnp.transpose(out, (0, 3, 1, 2))                              # -> NCHW


# ------------------------- parameter construction (deterministic) -------------------------

def _fold_bn(key, cout, eps=1e-5):
    k1, k2, k3, k4 = jax.random.split(key, 4)
    gamma = jax.random.uniform(k1, (cout,), jnp.float32, 0.5, 1.5)
    beta = 0.1 * jax.random.normal(k2, (cout,), jnp.float32)
    mean = 0.1 * jax.random.normal(k3, (cout,), jnp.float32)
    var = jax.random.uniform(k4, (cout,), jnp.float32, 0.5, 1.5)
    scale = gamma / jnp.sqrt(var + eps)
    bias = beta - mean * scale
    return scale.reshape(1, cout), bias.reshape(1, cout)


def make_params(key, cin, cout):
    ks = jax.random.split(key, 6)
    w1 = 0.1 * jax.random.normal(ks[0], (3, 3, cin, cout), jnp.float32)
    w2 = 0.1 * jax.random.normal(ks[1], (3, 3, cout, cout), jnp.float32)
    ws = 0.1 * jax.random.normal(ks[2], (cin, cout), jnp.float32)
    s1, b1 = _fold_bn(ks[3], cout)
    s2, b2 = _fold_bn(ks[4], cout)
    ss, bs = _fold_bn(ks[5], cout)
    return dict(w1=w1, s1=s1, b1=b1, w2=w2, s2=s2, b2=b2, ws=ws, ss=ss, bs=bs)


# ------------------------- pure-JAX reference for validation -------------------------

def _conv2d_ref(x_nhwc, w_hwio):
    return jax.lax.conv_general_dilated(
        x_nhwc, w_hwio, window_strides=(1, 1), padding="SAME",
        dimension_numbers=("NHWC", "HWIO", "NHWC"),
        precision=jax.lax.Precision.HIGHEST)


def ref_forward(x_nchw, p):
    x = jnp.transpose(x_nchw, (0, 2, 3, 1)).astype(jnp.float32)
    y1 = _leaky_relu(_conv2d_ref(x, p["w1"]) * p["s1"][0] + p["b1"][0])
    y2 = _conv2d_ref(y1, p["w2"]) * p["s2"][0] + p["b2"][0]
    sc = jnp.einsum("nhwc,co->nhwo", x, p["ws"],
                    precision=jax.lax.Precision.HIGHEST) * p["ss"][0] + p["bs"][0]
    out = _leaky_relu(y2 + sc)
    return jnp.transpose(out, (0, 3, 1, 2))


if __name__ == "__main__":
    N, Cin, Cout, H, W = 2, 4, 8, 16, 16   # stride=1, in_planes != out_planes -> 1x1 shortcut
    key = jax.random.PRNGKey(0)
    kx, kp = jax.random.split(key)
    x = jax.random.normal(kx, (N, Cin, H, W), jnp.float32)   # NCHW, like the PyTorch module
    params = make_params(kp, Cin, Cout)

    fwd = jax.jit(residual_block_forward)
    out = jax.block_until_ready(fwd(x, params))
    expected = jax.block_until_ready(ref_forward(x, params))

    assert out.shape == (N, Cout, H, W), out.shape
    max_err = float(jnp.max(jnp.abs(out - expected)))
    # bf16 matmul operands with f32 accumulation: tolerance loosened vs the pure-f32 path.
    assert jnp.allclose(out, expected, atol=5e-2, rtol=5e-2), max_err
    print("KERNEL_OK")
</pallas_src>

<mosaic_0001>
module attributes {stable_mosaic.version = 11 : i64} {
  func.func @residual_block_kernel(%arg0: i32, %arg1: memref<2x16x128xbf16, #tpu.memory_space<vmem>>, %arg2: memref<384x256xbf16, #tpu.memory_space<vmem>>, %arg3: memref<1x256xf32, #tpu.memory_space<vmem>>, %arg4: memref<1x256xf32, #tpu.memory_space<vmem>>, %arg5: memref<384x128xbf16, #tpu.memory_space<vmem>>, %arg6: memref<1x128xf32, #tpu.memory_space<vmem>>, %arg7: memref<1x128xf32, #tpu.memory_space<vmem>>, %arg8: memref<2x16x128xf32, #tpu.memory_space<vmem>>) attributes {dimension_semantics = [#tpu.dimension_semantics<parallel>], iteration_bounds = array<i64: 1>, scalar_prefetch = 0 : i64, scratch_operands = 0 : i64, tpu.core_type = #tpu.core_type<tc>, window_params = [{transform_indices = @transform_0, window_bounds = array<i64: 2, 16, 128>}, {pipeline_mode = #tpu.pipeline_mode<synchronous>, transform_indices = @transform_1, window_bounds = array<i64: 384, 256>}, {pipeline_mode = #tpu.pipeline_mode<synchronous>, transform_indices = @transform_2, window_bounds = array<i64: 1, 256>}, {pipeline_mode = #tpu.pipeline_mode<synchronous>, transform_indices = @transform_3, window_bounds = array<i64: 1, 256>}, {pipeline_mode = #tpu.pipeline_mode<synchronous>, transform_indices = @transform_4, window_bounds = array<i64: 384, 128>}, {pipeline_mode = #tpu.pipeline_mode<synchronous>, transform_indices = @transform_5, window_bounds = array<i64: 1, 128>}, {pipeline_mode = #tpu.pipeline_mode<synchronous>, transform_indices = @transform_6, window_bounds = array<i64: 1, 128>}, {transform_indices = @transform_7, window_bounds = array<i64: 2, 16, 128>}]} {
    %c0 = arith.constant 0 : index
    %c0_0 = arith.constant 0 : index
    %c0_1 = arith.constant 0 : index
    %0 = vector.load %arg1[%c0, %c0_0, %c0_1] : memref<2x16x128xbf16, #tpu.memory_space<vmem>>, vector<2x16x128xbf16>
    %cst = arith.constant 0.000000e+00 : bf16
    %1 = vector.broadcast %cst : bf16 to vector<2x1x128xbf16>
    %2 = vector.extract_strided_slice %0 {offsets = [0, 0, 0], sizes = [2, 15, 128], strides = [1, 1, 1]} : vector<2x16x128xbf16> to vector<2x15x128xbf16>
    %3 = tpu.concatenate %1, %2 in 1 : vector<2x1x128xbf16>, vector<2x15x128xbf16> -> vector<2x16x128xbf16>
    %4 = vector.extract_strided_slice %0 {offsets = [0, 1, 0], sizes = [2, 15, 128], strides = [1, 1, 1]} : vector<2x16x128xbf16> to vector<2x15x128xbf16>
    %5 = tpu.concatenate %4, %1 in 1 : vector<2x15x128xbf16>, vector<2x1x128xbf16> -> vector<2x16x128xbf16>
    %6 = tpu.concatenate %3, %0, %5 in 2 : vector<2x16x128xbf16>, vector<2x16x128xbf16>, vector<2x16x128xbf16> -> vector<2x16x384xbf16>
    %7 = vector.shape_cast %6 : vector<2x16x384xbf16> to vector<32x384xbf16>
    %c0_2 = arith.constant 0 : index
    %c0_3 = arith.constant 0 : index
    %8 = vector.load %arg2[%c0_2, %c0_3] : memref<384x256xbf16, #tpu.memory_space<vmem>>, vector<384x256xbf16>
    %cst_4 = arith.constant dense<0.000000e+00> : vector<32x256xf32>
    %9 = tpu.matmul %7, %8, %cst_4 {dimension_numbers = #tpu.dot_dimension_numbers<[1], [0], [0], [1], [0, 0, 1, 1], [], []>} : vector<32x384xbf16>, vector<384x256xbf16>, vector<32x256xf32> -> vector<32x256xf32>
    %c0_5 = arith.constant 0 : index
    %c0_6 = arith.constant 0 : index
    %10 = vector.load %arg3[%c0_5, %c0_6] : memref<1x256xf32, #tpu.memory_space<vmem>>, vector<1x256xf32>
    %11 = vector.broadcast %10 : vector<1x256xf32> to vector<32x256xf32>
    %12 = arith.mulf %9, %11 : vector<32x256xf32>
    %c0_7 = arith.constant 0 : index
    %c0_8 = arith.constant 0 : index
    %13 = vector.load %arg4[%c0_7, %c0_8] : memref<1x256xf32, #tpu.memory_space<vmem>>, vector<1x256xf32>
    %14 = vector.broadcast %13 : vector<1x256xf32> to vector<32x256xf32>
    %15 = arith.addf %12, %14 : vector<32x256xf32>
    %16 = vector.extract_strided_slice %15 {offsets = [0, 0], sizes = [32, 128], strides = [1, 1]} : vector<32x256xf32> to vector<32x128xf32>
    %cst_9 = arith.constant 0.000000e+00 : f32
    %17 = vector.broadcast %cst_9 : f32 to vector<32x128xf32>
    %18 = arith.cmpf ogt, %16, %17 : vector<32x128xf32>
    %cst_10 = arith.constant 1.000000e-01 : f32
    %19 = vector.broadcast %cst_10 : f32 to vector<32x128xf32>
    %20 = arith.mulf %19, %16 : vector<32x128xf32>
    %21 = arith.select %18, %16, %20 : vector<32x128xi1>, vector<32x128xf32>
    %22 = vector.extract_strided_slice %15 {offsets = [0, 128], sizes = [32, 128], strides = [1, 1]} : vector<32x256xf32> to vector<32x128xf32>
    %23 = arith.truncf %21 : vector<32x128xf32> to vector<32x128xbf16>
    %24 = vector.shape_cast %23 : vector<32x128xbf16> to vector<2x16x128xbf16>
    %cst_11 = arith.constant 0.000000e+00 : bf16
    %25 = vector.broadcast %cst_11 : bf16 to vector<2x1x128xbf16>
    %26 = vector.extract_strided_slice %24 {offsets = [0, 0, 0], sizes = [2, 15, 128], strides = [1, 1, 1]} : vector<2x16x128xbf16> to vector<2x15x128xbf16>
    %27 = tpu.concatenate %25, %26 in 1 : vector<2x1x128xbf16>, vector<2x15x128xbf16> -> vector<2x16x128xbf16>
    %28 = vector.extract_strided_slice %24 {offsets = [0, 1, 0], sizes = [2, 15, 128], strides = [1, 1, 1]} : vector<2x16x128xbf16> to vector<2x15x128xbf16>
    %29 = tpu.concatenate %28, %25 in 1 : vector<2x15x128xbf16>, vector<2x1x128xbf16> -> vector<2x16x128xbf16>
    %30 = tpu.concatenate %27, %24, %29 in 2 : vector<2x16x128xbf16>, vector<2x16x128xbf16>, vector<2x16x128xbf16> -> vector<2x16x384xbf16>
    %31 = vector.shape_cast %30 : vector<2x16x384xbf16> to vector<32x384xbf16>
    %c0_12 = arith.constant 0 : index
    %c0_13 = arith.constant 0 : index
    %32 = vector.load %arg5[%c0_12, %c0_13] : memref<384x128xbf16, #tpu.memory_space<vmem>>, vector<384x128xbf16>
    %cst_14 = arith.constant dense<0.000000e+00> : vector<32x128xf32>
    %33 = tpu.matmul %31, %32, %cst_14 {dimension_numbers = #tpu.dot_dimension_numbers<[1], [0], [0], [1], [0, 0, 1, 1], [], []>} : vector<32x384xbf16>, vector<384x128xbf16>, vector<32x128xf32> -> vector<32x128xf32>
    %c0_15 = arith.constant 0 : index
    %c0_16 = arith.constant 0 : index
    %34 = vector.load %arg6[%c0_15, %c0_16] : memref<1x128xf32, #tpu.memory_space<vmem>>, vector<1x128xf32>
    %35 = vector.broadcast %34 : vector<1x128xf32> to vector<32x128xf32>
    %36 = arith.mulf %33, %35 : vector<32x128xf32>
    %c0_17 = arith.constant 0 : index
    %c0_18 = arith.constant 0 : index
    %37 = vector.load %arg7[%c0_17, %c0_18] : memref<1x128xf32, #tpu.memory_space<vmem>>, vector<1x128xf32>
    %38 = vector.broadcast %37 : vector<1x128xf32> to vector<32x128xf32>
    %39 = arith.addf %36, %38 : vector<32x128xf32>
    %40 = arith.addf %39, %22 : vector<32x128xf32>
    %cst_19 = arith.constant 0.000000e+00 : f32
    %41 = vector.broadcast %cst_19 : f32 to vector<32x128xf32>
    %42 = arith.cmpf ogt, %40, %41 : vector<32x128xf32>
    %cst_20 = arith.constant 1.000000e-01 : f32
    %43 = vector.broadcast %cst_20 : f32 to vector<32x128xf32>
    %44 = arith.mulf %43, %40 : vector<32x128xf32>
    %45 = arith.select %42, %40, %44 : vector<32x128xi1>, vector<32x128xf32>
    %46 = vector.shape_cast %45 : vector<32x128xf32> to vector<2x16x128xf32>
    %c0_21 = arith.constant 0 : index
    %c0_22 = arith.constant 0 : index
    %c0_23 = arith.constant 0 : index
    %47 = vector.load %arg8[%c0_21, %c0_22, %c0_23] : memref<2x16x128xf32, #tpu.memory_space<vmem>>, vector<2x16x128xf32>
    tpu.vector_store %arg8[%c0_21, %c0_22, %c0_23], %46 {strides = array<i32>} : memref<2x16x128xf32, #tpu.memory_space<vmem>>, vector<2x16x128xf32>,
    return
  }
  func.func @transform_0(%arg0: i32) -> (i32, i32, i32) {
    %c0_i32 = arith.constant 0 : i32
    %c0_i32_0 = arith.constant 0 : i32
    %c0_i32_1 = arith.constant 0 : i32
    return %arg0, %c0_i32, %c0_i32_0 : i32, i32, i32
  }
  func.func @transform_1(%arg0: i32) -> (i32, i32) {
    %c0_i32 = arith.constant 0 : i32
    %c0_i32_0 = arith.constant 0 : i32
    %c0_i32_1 = arith.constant 0 : i32
    return %c0_i32, %c0_i32_0 : i32, i32
  }
  func.func @transform_2(%arg0: i32) -> (i32, i32) {
    %c0_i32 = arith.constant 0 : i32
    %c0_i32_0 = arith.constant 0 : i32
    %c0_i32_1 = arith.constant 0 : i32
    return %c0_i32, %c0_i32_0 : i32, i32
  }
  func.func @transform_3(%arg0: i32) -> (i32, i32) {
    %c0_i32 = arith.constant 0 : i32
    %c0_i32_0 = arith.constant 0 : i32
    %c0_i32_1 = arith.constant 0 : i32
    return %c0_i32, %c0_i32_0 : i32, i32
  }
  func.func @transform_4(%arg0: i32) -> (i32, i32) {
    %c0_i32 = arith.constant 0 : i32
    %c0_i32_0 = arith.constant 0 : i32
    %c0_i32_1 = arith.constant 0 : i32
    return %c0_i32, %c0_i32_0 : i32, i32
  }
  func.func @transform_5(%arg0: i32) -> (i32, i32) {
    %c0_i32 = arith.constant 0 : i32
    %c0_i32_0 = arith.constant 0 : i32
    %c0_i32_1 = arith.constant 0 : i32
    return %c0_i32, %c0_i32_0 : i32, i32
  }
  func.func @transform_6(%arg0: i32) -> (i32, i32) {
    %c0_i32 = arith.constant 0 : i32
    %c0_i32_0 = arith.constant 0 : i32
    %c0_i32_1 = arith.constant 0 : i32
    return %c0_i32, %c0_i32_0 : i32, i32
  }
  func.func @transform_7(%arg0: i32) -> (i32, i32, i32) {
    %c0_i32 = arith.constant 0 : i32
    %c0_i32_0 = arith.constant 0 : i32
    %c0_i32_1 = arith.constant 0 : i32
    return %arg0, %c0_i32, %c0_i32_0 : i32, i32, i32
  }
}

</mosaic_0001>

<llo_original>
// kernel: tile.34
$region0: #{tile.34}
  #allocation0 [shape = 's32[1]{0}', space=sflag, size = 0x4, scoped, tag = 'scoped memory for tile.34']
  %s0 = inlined_call_operand.vmem [shape: f32[8], index: 0, kind: input, shape index: {}]
  %s1 = inlined_call_operand.vmem [shape: f32[16,8], index: 1, kind: output, shape index: {}]
  // Predicated region
  $region2: #{tile.34} parent=0 // pred_check
    _
  $region3: #{tile.34} parent=0 // pred_check_branch
    %3 = sbr.rel (0) target = $region5
  $region4: #{tile.34} parent=0 // pred_region
    _
  $region5: #{tile.34} parent=0 // pred_fallthru
    _
  %v4 = vld [vmem:[%s0] ss:$0 sm:$0xff]
  %5 = vst [vmem:[%s1] sm:$0xff] %v4
  %s6 = scalar_lea.vmem %s1, 8
  %7 = vst [vmem:[%s6] sm:$0xff] %v4

// kernel: tile.35
$region0: #{tile.35}
  %s0 = inlined_call_operand.vmem [shape: f32[16,8], index: 0, kind: input, shape index: {}]
  %s1 = inlined_call_operand.vmem [shape: f32[128], index: 1, kind: output, shape index: {}]
  $region1: #{tile.35} parent=0
    #allocation0 [shape = 'u8[4096]{0}', space=vmem, size = 0x1000, scoped, tag = 'scoped mem for output reshape']
    %v2 = vld [vmem:[%s0] sm:$0x1]
    %vm3 = vcmask 64512
    %4 = vst.msk [vmem:[#allocation0] sm:$0x1] %vm3, %v2
    %s5 = scalar_lea.vmem %s0, 15
    %v6 = vld [vmem:[%s5] sm:$0x1]
    %7 = vrot.lane.b32.xlu0 %v6, 120
    %v8 = vpop.permute.xlu0 %7
    %vm9 = vcmask 1048512
    %10 = vst.msk [vmem:[#allocation0] sm:$0x1] %vm9, %v8
    %s11 = scalar_lea.vmem %s0, 14
    %v12 = vld [vmem:[%s11] sm:$0x1]
    %13 = vrot.lane.b32.xlu0 %v12, 112
    %v14 = vpop.permute.xlu0 %13
    %vm15 = vcmask 982912
    %16 = vst.msk [vmem:[#allocation0] sm:$0x1] %vm15, %v14
    %s17 = scalar_lea.vmem %s0, 13
    %v18 = vld [vmem:[%s17] sm:$0x1]
    %19 = vrot.lane.b32.xlu0 %v18, 104
    %v20 = vpop.permute.xlu0 %19
    %vm21 = vcmask 917312
    %22 = vst.msk [vmem:[#allocation0] sm:$0x1] %vm21, %v20
    %s23 = scalar_lea.vmem %s0, 12
    %v24 = vld [vmem:[%s23] sm:$0x1]
    %25 = vrot.lane.b32.xlu0 %v24, 96
    %v26 = vpop.permute.xlu0 %25
    %vm27 = vcmask 851712
    %28 = vst.msk [vmem:[#allocation0] sm:$0x1] %vm27, %v26
    %s29 = scalar_lea.vmem %s0, 11
    %v30 = vld [vmem:[%s29] sm:$0x1]
    %31 = vrot.lane.b32.xlu0 %v30, 88
    %v32 = vpop.permute.xlu0 %31
    %vm33 = vcmask 786112
    %34 = vst.msk [vmem:[#allocation0] sm:$0x1] %vm33, %v32
    %s35 = scalar_lea.vmem %s0, 10
    %v36 = vld [vmem:[%s35] sm:$0x1]
    %37 = vrot.lane.b32.xlu0 %v36, 80
    %v38 = vpop.permute.xlu0 %37
    %vm39 = vcmask 720512
    %40 = vst.msk [vmem:[#allocation0] sm:$0x1] %vm39, %v38
    %s41 = scalar_lea.vmem %s0, 9
    %v42 = vld [vmem:[%s41] sm:$0x1]
    %43 = vrot.lane.b32.xlu0 %v42, 72
    %v44 = vpop.permute.xlu0 %43
    %vm45 = vcmask 654912
    %46 = vst.msk [vmem:[#allocation0] sm:$0x1] %vm45, %v44
    %s47 = scalar_lea.vmem %s0, 8
    %v48 = vld [vmem:[%s47] sm:$0x1]
    %49 = vrot.lane.b32.xlu0 %v48, 64
    %v50 = vpop.permute.xlu0 %49
    %vm51 = vcmask 589312
    %52 = vst.msk [vmem:[#allocation0] sm:$0x1] %vm51, %v50
    %s53 = scalar_lea.vmem %s0, 7
    %v54 = vld [vmem:[%s53] sm:$0x1]
    %55 = vrot.lane.b32.xlu0 %v54, 56
    %v56 = vpop.permute.xlu0 %55
    %vm57 = vcmask 523712
    %58 = vst.msk [vmem:[#allocation0] sm:$0x1] %vm57, %v56
    %s59 = scalar_lea.vmem %s0, 6
    %v60 = vld [vmem:[%s59] sm:$0x1]
    %61 = vrot.lane.b32.xlu0 %v60, 48
    %v62 = vpop.permute.xlu0 %61
    %vm63 = vcmask 458112
    %64 = vst.msk [vmem:[#allocation0] sm:$0x1] %vm63, %v62
    %s65 = scalar_lea.vmem %s0, 5
    %v66 = vld [vmem:[%s65] sm:$0x1]
    %67 = vrot.lane.b32.xlu0 %v66, 40
    %v68 = vpop.permute.xlu0 %67
    %vm69 = vcmask 392512
    %70 = vst.msk [vmem:[#allocation0] sm:$0x1] %vm69, %v68
    %s71 = scalar_lea.vmem %s0, 4
    %v72 = vld [vmem:[%s71] sm:$0x1]
    %73 = vrot.lane.b32.xlu0 %v72, 32
    %v74 = vpop.permute.xlu0 %73
    %vm75 = vcmask 326912
    %76 = vst.msk [vmem:[#allocation0] sm:$0x1] %vm75, %v74
    %s77 = scalar_lea.vmem %s0, 3
    %v78 = vld [vmem:[%s77] sm:$0x1]
    %79 = vrot.lane.b32.xlu0 %v78, 24
    %v80 = vpop.permute.xlu0 %79
    %vm81 = vcmask 261312
    %82 = vst.msk [vmem:[#allocation0] sm:$0x1] %vm81, %v80
    %s83 = scalar_lea.vmem %s0, 2
    %v84 = vld [vmem:[%s83] sm:$0x1]
    %85 = vrot.lane.b32.xlu0 %v84, 16
    %v86 = vpop.permute.xlu0 %85
    %vm87 = vcmask 195712
    %88 = vst.msk [vmem:[#allocation0] sm:$0x1] %vm87, %v86
    %s89 = scalar_lea.vmem %s0, 1
    %v90 = vld [vmem:[%s89] sm:$0x1]
    %91 = vrot.lane.b32.xlu0 %v90, 8
    %v92 = vpop.permute.xlu0 %91
    %vm93 = vcmask 130112
    %94 = vst.msk [vmem:[#allocation0] sm:$0x1] %vm93, %v92
    %s96 = sshllo.u32 0, 1
    %v98 = vld [vmem:[#allocation0] sm:%s96]
    %s99 = sshllo.u32 0, 1
    %100 = vst [vmem:[%s1] sm:%s99] %v98

// kernel: tile.43
$region0: #{tile.43}
  %s0 = inlined_call_operand.vmem [shape: f32[16,8], index: 0, kind: input, shape index: {}]
  %s1 = inlined_call_operand.vmem [shape: f32[1,128], index: 1, kind: output, shape index: {}]
  $region1: #{tile.43} parent=0
    #allocation0 [shape = 'u8[4096]{0}', space=vmem, size = 0x1000, scoped, tag = 'scoped mem for output reshape']
    %v2 = vld [vmem:[%s0] sm:$0x1]
    %vm3 = vcmask 64512
    %4 = vst.msk [vmem:[#allocation0] sm:$0x1] %vm3, %v2
    %s5 = scalar_lea.vmem %s0, 15
    %v6 = vld [vmem:[%s5] sm:$0x1]
    %7 = vrot.lane.b32.xlu0 %v6, 120
    %v8 = vpop.permute.xlu0 %7
    %vm9 = vcmask 1048512
    %10 = vst.msk [vmem:[#allocation0] sm:$0x1] %vm9, %v8
    %s11 = scalar_lea.vmem %s0, 14
    %v12 = vld [vmem:[%s11] sm:$0x1]
    %13 = vrot.lane.b32.xlu0 %v12, 112
    %v14 = vpop.permute.xlu0 %13
    %vm15 = vcmask 982912
    %16 = vst.msk [vmem:[#allocation0] sm:$0x1] %vm15, %v14
    %s17 = scalar_lea.vmem %s0, 13
    %v18 = vld [vmem:[%s17] sm:$0x1]
    %19 = vrot.lane.b32.xlu0 %v18, 104
    %v20 = vpop.permute.xlu0 %19
    %vm21 = vcmask 917312
    %22 = vst.msk [vmem:[#allocation0] sm:$0x1] %vm21, %v20
    %s23 = scalar_lea.vmem %s0, 12
    %v24 = vld [vmem:[%s23] sm:$0x1]
    %25 = vrot.lane.b32.xlu0 %v24, 96
    %v26 = vpop.permute.xlu0 %25
    %vm27 = vcmask 851712
    %28 = vst.msk [vmem:[#allocation0] sm:$0x1] %vm27, %v26
    %s29 = scalar_lea.vmem %s0, 11
    %v30 = vld [vmem:[%s29] sm:$0x1]
    %31 = vrot.lane.b32.xlu0 %v30, 88
    %v32 = vpop.permute.xlu0 %31
    %vm33 = vcmask 786112
    %34 = vst.msk [vmem:[#allocation0] sm:$0x1] %vm33, %v32
    %s35 = scalar_lea.vmem %s0, 10
    %v36 = vld [vmem:[%s35] sm:$0x1]
    %37 = vrot.lane.b32.xlu0 %v36, 80
    %v38 = vpop.permute.xlu0 %37
    %vm39 = vcmask 720512
    %40 = vst.msk [vmem:[#allocation0] sm:$0x1] %vm39, %v38
    %s41 = scalar_lea.vmem %s0, 9
    %v42 = vld [vmem:[%s41] sm:$0x1]
    %43 = vrot.lane.b32.xlu0 %v42, 72
    %v44 = vpop.permute.xlu0 %43
    %vm45 = vcmask 654912
    %46 = vst.msk [vmem:[#allocation0] sm:$0x1] %vm45, %v44
    %s47 = scalar_lea.vmem %s0, 8
    %v48 = vld [vmem:[%s47] sm:$0x1]
    %49 = vrot.lane.b32.xlu0 %v48, 64
    %v50 = vpop.permute.xlu0 %49
    %vm51 = vcmask 589312
    %52 = vst.msk [vmem:[#allocation0] sm:$0x1] %vm51, %v50
    %s53 = scalar_lea.vmem %s0, 7
    %v54 = vld [vmem:[%s53] sm:$0x1]
    %55 = vrot.lane.b32.xlu0 %v54, 56
    %v56 = vpop.permute.xlu0 %55
    %vm57 = vcmask 523712
    %58 = vst.msk [vmem:[#allocation0] sm:$0x1] %vm57, %v56
    %s59 = scalar_lea.vmem %s0, 6
    %v60 = vld [vmem:[%s59] sm:$0x1]
    %61 = vrot.lane.b32.xlu0 %v60, 48
    %v62 = vpop.permute.xlu0 %61
    %vm63 = vcmask 458112
    %64 = vst.msk [vmem:[#allocation0] sm:$0x1] %vm63, %v62
    %s65 = scalar_lea.vmem %s0, 5
    %v66 = vld [vmem:[%s65] sm:$0x1]
    %67 = vrot.lane.b32.xlu0 %v66, 40
    %v68 = vpop.permute.xlu0 %67
    %vm69 = vcmask 392512
    %70 = vst.msk [vmem:[#allocation0] sm:$0x1] %vm69, %v68
    %s71 = scalar_lea.vmem %s0, 4
    %v72 = vld [vmem:[%s71] sm:$0x1]
    %73 = vrot.lane.b32.xlu0 %v72, 32
    %v74 = vpop.permute.xlu0 %73
    %vm75 = vcmask 326912
    %76 = vst.msk [vmem:[#allocation0] sm:$0x1] %vm75, %v74
    %s77 = scalar_lea.vmem %s0, 3
    %v78 = vld [vmem:[%s77] sm:$0x1]
    %79 = vrot.lane.b32.xlu0 %v78, 24
    %v80 = vpop.permute.xlu0 %79
    %vm81 = vcmask 261312
    %82 = vst.msk [vmem:[#allocation0] sm:$0x1] %vm81, %v80
    %s83 = scalar_lea.vmem %s0, 2
    %v84 = vld [vmem:[%s83] sm:$0x1]
    %85 = vrot.lane.b32.xlu0 %v84, 16
    %v86 = vpop.permute.xlu0 %85
    %vm87 = vcmask 195712
    %88 = vst.msk [vmem:[#allocation0] sm:$0x1] %vm87, %v86
    %s89 = scalar_lea.vmem %s0, 1
    %v90 = vld [vmem:[%s89] sm:$0x1]
    %91 = vrot.lane.b32.xlu0 %v90, 8
    %v92 = vpop.permute.xlu0 %91
    %vm93 = vcmask 130112
    %94 = vst.msk [vmem:[#allocation0] sm:$0x1] %vm93, %v92
    %s96 = sshllo.u32 0, 1
    %v98 = vld [vmem:[#allocation0] sm:%s96]
    %s99 = sshllo.u32 0, 1
    %100 = vst [vmem:[%s1] sm:%s99] %v98

// kernel: residual_block_forward.1
$region0: #{residual_block_forward.1}
  #allocation0 [shape = 'u32[]', space=smem, size = 0x4, offset = 0x4, fixed_abs, tag = 'smem constant byte address 0x4 - core index']
  #allocation1 [shape = 'u32[144,128]{1,0:T(1,128)}', space=vmem, size = 0x12000, scoped, tag = 'internal scratch']
  %s0 = inlined_call_operand.vmem [shape: bf16[2,16,128], index: 0, kind: input, shape index: {}]
  %s1 = inlined_call_operand.vmem [shape: bf16[384,256], index: 1, kind: input, shape index: {}]
  %s2 = inlined_call_operand.vmem [shape: f32[1,256], index: 2, kind: input, shape index: {}]
  %s3 = inlined_call_operand.vmem [shape: f32[1,256], index: 3, kind: input, shape index: {}]
  %s4 = inlined_call_operand.vmem [shape: bf16[384,128], index: 4, kind: input, shape index: {}]
  %s5 = inlined_call_operand.vmem [shape: f32[1,128], index: 5, kind: input, shape index: {}]
  %s6 = inlined_call_operand.vmem [shape: f32[1,128], index: 6, kind: input, shape index: {}]
  %s7 = inlined_call_operand.vmem [shape: f32[2,16,128], index: 7, kind: output, shape index: {}]
  %s8 = sld [smem:[#allocation0]]
  $region38: #{residual_block_forward.1} parent=0
    _
  %s10 = ssub.s32 1, %s8
  %s11 = scalar_select 0, %s10, %s8
  // Predicated region
  $region2: #{residual_block_forward.1} parent=0 // pred_check
    _
  $region3: #{residual_block_forward.1} parent=0 // pred_check_branch
    %13 = sbr.rel (0) target = $region5
  $region4: #{residual_block_forward.1} parent=0 // pred_region
    _
  $region5: #{residual_block_forward.1} parent=0 // pred_fallthru
    _
  // Predicated region
  $region6: #{residual_block_forward.1} parent=0 // pred_check
    _
  $region7: #{residual_block_forward.1} parent=0 // pred_check_branch
    %15 = sbr.rel (0) target = $region9
  $region8: #{residual_block_forward.1} parent=0 // pred_region
    _
  $region9: #{residual_block_forward.1} parent=0 // pred_fallthru
    _
  // Predicated region
  $region10: #{residual_block_forward.1} parent=0 // pred_check
    _
  $region11: #{residual_block_forward.1} parent=0 // pred_check_branch
    %17 = sbr.rel (0) target = $region13
  $region12: #{residual_block_forward.1} parent=0 // pred_region
    _
  $region13: #{residual_block_forward.1} parent=0 // pred_fallthru
    _
  // Predicated region
  $region14: #{residual_block_forward.1} parent=0 // pred_check
    _
  $region15: #{residual_block_forward.1} parent=0 // pred_check_branch
    %19 = sbr.rel (0) target = $region17
  $region16: #{residual_block_forward.1} parent=0 // pred_region
    _
  $region17: #{residual_block_forward.1} parent=0 // pred_fallthru
    _
  // Predicated region
  $region18: #{residual_block_forward.1} parent=0 // pred_check
    _
  $region19: #{residual_block_forward.1} parent=0 // pred_check_branch
    %21 = sbr.rel (0) target = $region21
  $region20: #{residual_block_forward.1} parent=0 // pred_region
    _
  $region21: #{residual_block_forward.1} parent=0 // pred_fallthru
    _
  // Predicated region
  $region22: #{residual_block_forward.1} parent=0 // pred_check
    _
  $region23: #{residual_block_forward.1} parent=0 // pred_check_branch
    %23 = sbr.rel (0) target = $region25
  $region24: #{residual_block_forward.1} parent=0 // pred_region
    _
  $region25: #{residual_block_forward.1} parent=0 // pred_fallthru
    _
  // Predicated region
  $region26: #{residual_block_forward.1} parent=0 // pred_check
    _
  $region27: #{residual_block_forward.1} parent=0 // pred_check_branch
    %25 = sbr.rel (0) target = $region29
  $region28: #{residual_block_forward.1} parent=0 // pred_region
    _
  $region29: #{residual_block_forward.1} parent=0 // pred_fallthru
    _
  %v27 = vld [vmem:[%s0] sm:$0xf]
  %v28 = vld [vmem:[%s0 + $0x4] sm:$0xf]
  %v29 = vld [vmem:[%s0 + $0x8] sm:$0xf]
  %v30 = vld [vmem:[%s0 + $0xc] sm:$0xf]
  %v35 = vunpack.c.l.b16 %v27
  %v36 = vunpack.c.l.b16 %v28
  %v37 = vunpack.c.l.b16 %v29
  %v38 = vunpack.c.l.b16 %v30
  %v39 = vpack.c.b16 %v36, %v35
  %v40 = vpack.c.b16 %v38, %v37
  %v42 = vshrl.u32 %v39, 16
  %v44 = vrot.slane %v42, 7
  %v45 = vshll.u32 %v39, 16
  %v47 = vor.u32 %v44, %v45
  %v49 = vshrl.u32 %v40, 16
  %v51 = vrot.slane %v49, 7
  %v52 = vshll.u32 %v40, 16
  %v54 = vor.u32 %v51, %v52
  %vm57 = vcmask 1040384
  %vm58 = vsmask.f32 256
  %vm59 = vmand %vm57, %vm58
  %v60 = vsel %vm59, 0, %v47
  %v61 = vsel %vm59, 0, %v54
  %v62 = vrot.slane %v45, 1
  %v63 = vor.u32 %v42, %v62
  %v64 = vrot.slane %v52, 1
  %v65 = vor.u32 %v49, %v64
  %vm68 = vcmask 1047552
  %vm69 = vsmask.f32 7424
  %vm70 = vmand %vm68, %vm69
  %v71 = vsel %vm70, %v63, 0
  %v72 = vsel %vm70, %v65, 0
  %v75 = vld [vmem:[%s1] sm:$0xff]
  %v76 = vld [vmem:[%s1 + $0x8] sm:$0xff]
  %v77 = vld [vmem:[%s1 + $0x10] sm:$0xff]
  %v78 = vld [vmem:[%s1 + $0x18] sm:$0xff]
  %v79 = vld [vmem:[%s1 + $0x20] sm:$0xff]
  %v80 = vld [vmem:[%s1 + $0x28] sm:$0xff]
  %v81 = vld [vmem:[%s1 + $0x30] sm:$0xff]
  %v82 = vld [vmem:[%s1 + $0x38] sm:$0xff]
  %v83 = vld [vmem:[%s1 + $0x40] sm:$0xff]
  %v84 = vld [vmem:[%s1 + $0x48] sm:$0xff]
  %v85 = vld [vmem:[%s1 + $0x50] sm:$0xff]
  %v86 = vld [vmem:[%s1 + $0x58] sm:$0xff]
  %v87 = vld [vmem:[%s1 + $0x60] sm:$0xff]
  %v88 = vld [vmem:[%s1 + $0x68] sm:$0xff]
  %v89 = vld [vmem:[%s1 + $0x70] sm:$0xff]
  %v90 = vld [vmem:[%s1 + $0x78] sm:$0xff]
  %v91 = vld [vmem:[%s1 + $0x80] sm:$0xff]
  %v92 = vld [vmem:[%s1 + $0x88] sm:$0xff]
  %v93 = vld [vmem:[%s1 + $0x90] sm:$0xff]
  %v94 = vld [vmem:[%s1 + $0x98] sm:$0xff]
  %v95 = vld [vmem:[%s1 + $0xa0] sm:$0xff]
  %v96 = vld [vmem:[%s1 + $0xa8] sm:$0xff]
  %v97 = vld [vmem:[%s1 + $0xb0] sm:$0xff]
  %v98 = vld [vmem:[%s1 + $0xb8] sm:$0xff]
  %v99 = vld [vmem:[%s1 + $0xc0] sm:$0xff]
  %v100 = vld [vmem:[%s1 + $0xc8] sm:$0xff]
  %v101 = vld [vmem:[%s1 + $0xd0] sm:$0xff]
  %v102 = vld [vmem:[%s1 + $0xd8] sm:$0xff]
  %v103 = vld [vmem:[%s1 + $0xe0] sm:$0xff]
  %v104 = vld [vmem:[%s1 + $0xe8] sm:$0xff]
  %v105 = vld [vmem:[%s1 + $0xf0] sm:$0xff]
  %v106 = vld [vmem:[%s1 + $0xf8] sm:$0xff]
  %v107 = vld [vmem:[%s1 + $0x100] sm:$0xff]
  %v108 = vld [vmem:[%s1 + $0x108] sm:$0xff]
  %v109 = vld [vmem:[%s1 + $0x110] sm:$0xff]
  %v110 = vld [vmem:[%s1 + $0x118] sm:$0xff]
  %v111 = vld [vmem:[%s1 + $0x120] sm:$0xff]
  %v112 = vld [vmem:[%s1 + $0x128] sm:$0xff]
  %v113 = vld [vmem:[%s1 + $0x130] sm:$0xff]
  %v114 = vld [vmem:[%s1 + $0x138] sm:$0xff]
  %v115 = vld [vmem:[%s1 + $0x140] sm:$0xff]
  %v116 = vld [vmem:[%s1 + $0x148] sm:$0xff]
  %v117 = vld [vmem:[%s1 + $0x150] sm:$0xff]
  %v118 = vld [vmem:[%s1 + $0x158] sm:$0xff]
  %v119 = vld [vmem:[%s1 + $0x160] sm:$0xff]
  %v120 = vld [vmem:[%s1 + $0x168] sm:$0xff]
  %v121 = vld [vmem:[%s1 + $0x170] sm:$0xff]
  %v122 = vld [vmem:[%s1 + $0x178] sm:$0xff]
  %v171 = vunpack.c.l.b16 %v75
  %v172 = vunpack.c.h.b16 %v75
  %v173 = vunpack.c.l.b16 %v76
  %v174 = vunpack.c.h.b16 %v76
  %v175 = vunpack.c.l.b16 %v77
  %v176 = vunpack.c.h.b16 %v77
  %v177 = vunpack.c.l.b16 %v78
  %v178 = vunpack.c.h.b16 %v78
  %v179 = vunpack.c.l.b16 %v79
  %v180 = vunpack.c.h.b16 %v79
  %v181 = vunpack.c.l.b16 %v80
  %v182 = vunpack.c.h.b16 %v80
  %v183 = vunpack.c.l.b16 %v81
  %v184 = vunpack.c.h.b16 %v81
  %v185 = vunpack.c.l.b16 %v82
  %v186 = vunpack.c.h.b16 %v82
  %v187 = vunpack.c.l.b16 %v83
  %v188 = vunpack.c.h.b16 %v83
  %v189 = vunpack.c.l.b16 %v84
  %v190 = vunpack.c.h.b16 %v84
  %v191 = vunpack.c.l.b16 %v85
  %v192 = vunpack.c.h.b16 %v85
  %v193 = vunpack.c.l.b16 %v86
  %v194 = vunpack.c.h.b16 %v86
  %v195 = vunpack.c.l.b16 %v87
  %v196 = vunpack.c.h.b16 %v87
  %v197 = vunpack.c.l.b16 %v88
  %v198 = vunpack.c.h.b16 %v88
  %v199 = vunpack.c.l.b16 %v89
  %v200 = vunpack.c.h.b16 %v89
  %v201 = vunpack.c.l.b16 %v90
  %v202 = vunpack.c.h.b16 %v90
  %v203 = vunpack.c.l.b16 %v91
  %v204 = vunpack.c.h.b16 %v91
  %v205 = vunpack.c.l.b16 %v92
  %v206 = vunpack.c.h.b16 %v92
  %v207 = vunpack.c.l.b16 %v93
  %v208 = vunpack.c.h.b16 %v93
  %v209 = vunpack.c.l.b16 %v94
  %v210 = vunpack.c.h.b16 %v94
  %v211 = vunpack.c.l.b16 %v95
  %v212 = vunpack.c.h.b16 %v95
  %v213 = vunpack.c.l.b16 %v96
  %v214 = vunpack.c.h.b16 %v96
  %v215 = vunpack.c.l.b16 %v97
  %v216 = vunpack.c.h.b16 %v97
  %v217 = vunpack.c.l.b16 %v98
  %v218 = vunpack.c.h.b16 %v98
  %v219 = vunpack.c.l.b16 %v99
  %v220 = vunpack.c.h.b16 %v99
  %v221 = vunpack.c.l.b16 %v100
  %v222 = vunpack.c.h.b16 %v100
  %v223 = vunpack.c.l.b16 %v101
  %v224 = vunpack.c.h.b16 %v101
  %v225 = vunpack.c.l.b16 %v102
  %v226 = vunpack.c.h.b16 %v102
  %v227 = vunpack.c.l.b16 %v103
  %v228 = vunpack.c.h.b16 %v103
  %v229 = vunpack.c.l.b16 %v104
  %v230 = vunpack.c.h.b16 %v104
  %v231 = vunpack.c.l.b16 %v105
  %v232 = vunpack.c.h.b16 %v105
  %v233 = vunpack.c.l.b16 %v106
  %v234 = vunpack.c.h.b16 %v106
  %v235 = vunpack.c.l.b16 %v107
  %v236 = vunpack.c.h.b16 %v107
  %v237 = vunpack.c.l.b16 %v108
  %v238 = vunpack.c.h.b16 %v108
  %v239 = vunpack.c.l.b16 %v109
  %v240 = vunpack.c.h.b16 %v109
  %v241 = vunpack.c.l.b16 %v110
  %v242 = vunpack.c.h.b16 %v110
  %v243 = vunpack.c.l.b16 %v111
  %v244 = vunpack.c.h.b16 %v111
  %v245 = vunpack.c.l.b16 %v112
  %v246 = vunpack.c.h.b16 %v112
  %v247 = vunpack.c.l.b16 %v113
  %v248 = vunpack.c.h.b16 %v113
  %v249 = vunpack.c.l.b16 %v114
  %v250 = vunpack.c.h.b16 %v114
  %v251 = vunpack.c.l.b16 %v115
  %v252 = vunpack.c.h.b16 %v115
  %v253 = vunpack.c.l.b16 %v116
  %v254 = vunpack.c.h.b16 %v116
  %v255 = vunpack.c.l.b16 %v117
  %v256 = vunpack.c.h.b16 %v117
  %v257 = vunpack.c.l.b16 %v118
  %v258 = vunpack.c.h.b16 %v118
  %v259 = vunpack.c.l.b16 %v119
  %v260 = vunpack.c.h.b16 %v119
  %v261 = vunpack.c.l.b16 %v120
  %v262 = vunpack.c.h.b16 %v120
  %v263 = vunpack.c.l.b16 %v121
  %v264 = vunpack.c.h.b16 %v121
  %v265 = vunpack.c.l.b16 %v122
  %v266 = vunpack.c.h.b16 %v122
  %v267 = vpack.c.b16 %v173, %v171
  %v268 = vpack.c.b16 %v174, %v172
  %v269 = vpack.c.b16 %v177, %v175
  %v270 = vpack.c.b16 %v178, %v176
  %v271 = vpack.c.b16 %v181, %v179
  %v272 = vpack.c.b16 %v182, %v180
  %v273 = vpack.c.b16 %v185, %v183
  %v274 = vpack.c.b16 %v186, %v184
  %v275 = vpack.c.b16 %v189, %v187
  %v276 = vpack.c.b16 %v190, %v188
  %v277 = vpack.c.b16 %v193, %v191
  %v278 = vpack.c.b16 %v194, %v192
  %v279 = vpack.c.b16 %v197, %v195
  %v280 = vpack.c.b16 %v198, %v196
  %v281 = vpack.c.b16 %v201, %v199
  %v282 = vpack.c.b16 %v202, %v200
  %v283 = vpack.c.b16 %v205, %v203
  %v284 = vpack.c.b16 %v206, %v204
  %v285 = vpack.c.b16 %v209, %v207
  %v286 = vpack.c.b16 %v210, %v208
  %v287 = vpack.c.b16 %v213, %v211
  %v288 = vpack.c.b16 %v214, %v212
  %v289 = vpack.c.b16 %v217, %v215
  %v290 = vpack.c.b16 %v218, %v216
  %v291 = vpack.c.b16 %v221, %v219
  %v292 = vpack.c.b16 %v222, %v220
  %v293 = vpack.c.b16 %v225, %v223
  %v294 = vpack.c.b16 %v226, %v224
  %v295 = vpack.c.b16 %v229, %v227
  %v296 = vpack.c.b16 %v230, %v228
  %v297 = vpack.c.b16 %v233, %v231
  %v298 = vpack.c.b16 %v234, %v232
  %v299 = vpack.c.b16 %v237, %v235
  %v300 = vpack.c.b16 %v238, %v236
  %v301 = vpack.c.b16 %v241, %v239
  %v302 = vpack.c.b16 %v242, %v240
  %v303 = vpack.c.b16 %v245, %v243
  %v304 = vpack.c.b16 %v246, %v244
  %v305 = vpack.c.b16 %v249, %v247
  %v306 = vpack.c.b16 %v250, %v248
  %v307 = vpack.c.b16 %v253, %v251
  %v308 = vpack.c.b16 %v254, %v252
  %v309 = vpack.c.b16 %v257, %v255
  %v310 = vpack.c.b16 %v258, %v256
  %v311 = vpack.c.b16 %v261, %v259
  %v312 = vpack.c.b16 %v262, %v260
  %v313 = vpack.c.b16 %v265, %v263
  %v314 = vpack.c.b16 %v266, %v264
  %363 = vmatprep.subr.bf16.mxu0 %v268
  %364 = vmatpush1.bf16.msra.mxu0 %v267
  %365 = vmatprep.subr.bf16.mxu0 %v270
  %366 = vmatpush1.bf16.msra.mxu0 %v269
  %367 = vmatprep.subr.bf16.mxu0 %v272
  %368 = vmatpush1.bf16.msra.mxu0 %v271
  %369 = vmatprep.subr.bf16.mxu0 %v274
  %370 = vmatpush1.bf16.msra.mxu0 %v273
  %371 = vmatprep.subr.bf16.mxu0 %v276
  %372 = vmatpush1.bf16.msra.mxu0 %v275
  %373 = vmatprep.subr.bf16.mxu0 %v278
  %374 = vmatpush1.bf16.msra.mxu0 %v277
  %375 = vmatprep.subr.bf16.mxu0 %v280
  %376 = vmatpush1.bf16.msra.mxu0 %v279
  %377 = vmatprep.subr.bf16.mxu0 %v282
  %378 = vmatpush1.bf16.msra.mxu0 %v281
  %379 = vmatprep.subr.bf16.mxu0 %v284
  %380 = vmatpush1.bf16.msra.mxu0 %v283
  %381 = vmatprep.subr.bf16.mxu0 %v286
  %382 = vmatpush1.bf16.msra.mxu0 %v285
  %383 = vmatprep.subr.bf16.mxu0 %v288
  %384 = vmatpush1.bf16.msra.mxu0 %v287
  %385 = vmatprep.subr.bf16.mxu0 %v290
  %386 = vmatpush1.bf16.msra.mxu0 %v289
  %387 = vmatprep.subr.bf16.mxu0 %v292
  %388 = vmatpush1.bf16.msra.mxu0 %v291
  %389 = vmatprep.subr.bf16.mxu0 %v294
  %390 = vmatpush1.bf16.msra.mxu0 %v293
  %391 = vmatprep.subr.bf16.mxu0 %v296
  %392 = vmatpush1.bf16.msra.mxu0 %v295
  %393 = vmatprep.subr.bf16.mxu0 %v298
  %394 = vmatpush1.bf16.msra.mxu0 %v297
  %395 = vmatprep.mubr.bf16.mxu0 %v39
  %396 = vmatmul.mubr.bf16.gmra.mrb[0].mxu0 %v60
  %v397 = vpop.f32.mrb[0].mxu0
  %v398 = vadd.f32 0.0, %v397
  %v399 = vpop.f32.mrb[0].mxu0
  %v400 = vadd.f32 0.0, %v399
  %v401 = vpop.f32.mrb[0].mxu0
  %v402 = vadd.f32 0.0, %v401
  %v403 = vpop.f32.mrb[0].mxu0
  %v404 = vadd.f32 0.0, %v403
  %405 = vmatprep.mubr.bf16.mxu0 %v40
  %406 = vmatmul.mubr.bf16.gmra.mrb[0].mxu0 %v61
  %v407 = vpop.f32.mrb[0].mxu0
  %v408 = vadd.f32 0.0, %v407
  %v409 = vpop.f32.mrb[0].mxu0
  %v410 = vadd.f32 0.0, %v409
  %v411 = vpop.f32.mrb[0].mxu0
  %v412 = vadd.f32 0.0, %v411
  %v413 = vpop.f32.mrb[0].mxu0
  %v414 = vadd.f32 0.0, %v413
  %415 = vdwg.mxu0
  %416 = vmatprep.subr.bf16.mxu0 %v300
  %417 = vmatpush1.bf16.msra.mxu0 %v299
  %418 = vmatprep.subr.bf16.mxu0 %v302
  %419 = vmatpush1.bf16.msra.mxu0 %v301
  %420 = vmatprep.subr.bf16.mxu0 %v304
  %421 = vmatpush1.bf16.msra.mxu0 %v303
  %422 = vmatprep.subr.bf16.mxu0 %v306
  %423 = vmatpush1.bf16.msra.mxu0 %v305
  %424 = vmatprep.subr.bf16.mxu0 %v308
  %425 = vmatpush1.bf16.msra.mxu0 %v307
  %426 = vmatprep.subr.bf16.mxu0 %v310
  %427 = vmatpush1.bf16.msra.mxu0 %v309
  %428 = vmatprep.subr.bf16.mxu0 %v312
  %429 = vmatpush1.bf16.msra.mxu0 %v311
  %430 = vmatprep.subr.bf16.mxu0 %v314
  %431 = vmatpush1.bf16.msra.mxu0 %v313
  %432 = vmatprep.subr.bf16.mxu0 0
  %433 = vmatpush1.bf16.msra.mxu0 0
  %434 = vmatprep.subr.bf16.mxu0 0
  %435 = vmatpush1.bf16.msra.mxu0 0
  %436 = vmatprep.subr.bf16.mxu0 0
  %437 = vmatpush1.bf16.msra.mxu0 0
  %438 = vmatprep.subr.bf16.mxu0 0
  %439 = vmatpush1.bf16.msra.mxu0 0
  %440 = vmatprep.subr.bf16.mxu0 0
  %441 = vmatpush1.bf16.msra.mxu0 0
  %442 = vmatprep.subr.bf16.mxu0 0
  %443 = vmatpush1.bf16.msra.mxu0 0
  %444 = vmatprep.subr.bf16.mxu0 0
  %445 = vmatpush1.bf16.msra.mxu0 0
  %446 = vmatprep.subr.bf16.mxu0 0
  %447 = vmatpush1.bf16.msra.mxu0 0
  %448 = vmatprep.mubr.bf16.mxu0 0
  %449 = vmatmul.mubr.bf16.gmra.mrb[0].mxu0 %v71
  %v450 = vpop.f32.mrb[0].mxu0
  %v451 = vadd.f32 %v398, %v450
  %v452 = vpop.f32.mrb[0].mxu0
  %v453 = vadd.f32 %v400, %v452
  %v454 = vpop.f32.mrb[0].mxu0
  %v455 = vadd.f32 %v402, %v454
  %v456 = vpop.f32.mrb[0].mxu0
  %v457 = vadd.f32 %v404, %v456
  %458 = vmatprep.mubr.bf16.mxu0 0
  %459 = vmatmul.mubr.bf16.gmra.mrb[0].mxu0 %v72
  %v460 = vpop.f32.mrb[0].mxu0
  %v461 = vadd.f32 %v408, %v460
  %v462 = vpop.f32.mrb[0].mxu0
  %v463 = vadd.f32 %v410, %v462
  %v464 = vpop.f32.mrb[0].mxu0
  %v465 = vadd.f32 %v412, %v464
  %v466 = vpop.f32.mrb[0].mxu0
  %v467 = vadd.f32 %v414, %v466
  %468 = vdwg.mxu0
  %v469 = vld [vmem:[%s2] sm:$0x3]
  %v471 = vlaneseq
  %v472 = vshrl.u32 %v471, 7
  %v473 = vsub.s32 0, %v472
  %v474 = vrot.slane %v469, %v473
  %v475 = vlaneseq
  %v476 = vshrl.u32 %v475, 7
  %v477 = vsub.s32 1, %v476
  %v478 = vrot.slane %v469, %v477
  %v481 = vmul.f32 %v451, %v474
  %v482 = vmul.f32 %v453, %v478
  %v483 = vmul.f32 %v455, %v474
  %v484 = vmul.f32 %v457, %v478
  %v485 = vmul.f32 %v461, %v474
  %v486 = vmul.f32 %v463, %v478
  %v487 = vmul.f32 %v465, %v474
  %v488 = vmul.f32 %v467, %v478
  %v489 = vld [vmem:[%s3] sm:$0x3]
  %v491 = vlaneseq
  %v492 = vshrl.u32 %v491, 7
  %v493 = vsub.s32 0, %v492
  %v494 = vrot.slane %v489, %v493
  %v495 = vlaneseq
  %v496 = vshrl.u32 %v495, 7
  %v497 = vsub.s32 1, %v496
  %v498 = vrot.slane %v489, %v497
  %v501 = vadd.f32 %v481, %v494
  %v502 = vadd.f32 %v482, %v498
  %v503 = vadd.f32 %v483, %v494
  %v504 = vadd.f32 %v484, %v498
  %v505 = vadd.f32 %v485, %v494
  %v506 = vadd.f32 %v486, %v498
  %v507 = vadd.f32 %v487, %v494
  %v508 = vadd.f32 %v488, %v498
  %vm509 = vcmp.gt.f32.partialorder %v501, 0.0
  %vm510 = vcmp.gt.f32.partialorder %v503, 0.0
  %vm511 = vcmp.gt.f32.partialorder %v505, 0.0
  %vm512 = vcmp.gt.f32.partialorder %v507, 0.0
  %v513 = vmul.f32 %v501, 0.1
  %v514 = vmul.f32 %v503, 0.1
  %v515 = vmul.f32 %v505, 0.1
  %v516 = vmul.f32 %v507, 0.1
  %v517 = vsel %vm509, %v501, %v513
  %v518 = vsel %vm510, %v503, %v514
  %v519 = vsel %vm511, %v505, %v515
  %v520 = vsel %vm512, %v507, %v516
  %v521 = vpack.c.bf16 %v518, %v517
  %v522 = vpack.c.bf16 %v520, %v519
  %v524 = vshrl.u32 %v521, 16
  %v526 = vrot.slane %v524, 7
  %v527 = vshll.u32 %v521, 16
  %v529 = vor.u32 %v526, %v527
  %v531 = vshrl.u32 %v522, 16
  %v533 = vrot.slane %v531, 7
  %v534 = vshll.u32 %v522, 16
  %v536 = vor.u32 %v533, %v534
  %v539 = vsel %vm59, 0, %v529
  %v540 = vsel %vm59, 0, %v536
  %v541 = vrot.slane %v527, 1
  %v542 = vor.u32 %v524, %v541
  %v543 = vrot.slane %v534, 1
  %v544 = vor.u32 %v531, %v543
  %v547 = vsel %vm70, %v542, 0
  %v548 = vsel %vm70, %v544, 0
  %v549 = vld [vmem:[%s4] sm:$0xf]
  %v550 = vld [vmem:[%s4 + $0x4] sm:$0xf]
  %v551 = vld [vmem:[%s4 + $0x8] sm:$0xf]
  %v552 = vld [vmem:[%s4 + $0xc] sm:$0xf]
  %v553 = vld [vmem:[%s4 + $0x10] sm:$0xf]
  %v554 = vld [vmem:[%s4 + $0x14] sm:$0xf]
  %v555 = vld [vmem:[%s4 + $0x18] sm:$0xf]
  %v556 = vld [vmem:[%s4 + $0x1c] sm:$0xf]
  %v557 = vld [vmem:[%s4 + $0x20] sm:$0xf]
  %v558 = vld [vmem:[%s4 + $0x24] sm:$0xf]
  %v559 = vld [vmem:[%s4 + $0x28] sm:$0xf]
  %v560 = vld [vmem:[%s4 + $0x2c] sm:$0xf]
  %v561 = vld [vmem:[%s4 + $0x30] sm:$0xf]
  %v562 = vld [vmem:[%s4 + $0x34] sm:$0xf]
  %v563 = vld [vmem:[%s4 + $0x38] sm:$0xf]
  %v564 = vld [vmem:[%s4 + $0x3c] sm:$0xf]
  %v565 = vld [vmem:[%s4 + $0x40] sm:$0xf]
  %v566 = vld [vmem:[%s4 + $0x44] sm:$0xf]
  %v567 = vld [vmem:[%s4 + $0x48] sm:$0xf]
  %v568 = vld [vmem:[%s4 + $0x4c] sm:$0xf]
  %v569 = vld [vmem:[%s4 + $0x50] sm:$0xf]
  %v570 = vld [vmem:[%s4 + $0x54] sm:$0xf]
  %v571 = vld [vmem:[%s4 + $0x58] sm:$0xf]
  %v572 = vld [vmem:[%s4 + $0x5c] sm:$0xf]
  %v573 = vld [vmem:[%s4 + $0x60] sm:$0xf]
  %v574 = vld [vmem:[%s4 + $0x64] sm:$0xf]
  %v575 = vld [vmem:[%s4 + $0x68] sm:$0xf]
  %v576 = vld [vmem:[%s4 + $0x6c] sm:$0xf]
  %v577 = vld [vmem:[%s4 + $0x70] sm:$0xf]
  %v578 = vld [vmem:[%s4 + $0x74] sm:$0xf]
  %v579 = vld [vmem:[%s4 + $0x78] sm:$0xf]
  %v580 = vld [vmem:[%s4 + $0x7c] sm:$0xf]
  %v581 = vld [vmem:[%s4 + $0x80] sm:$0xf]
  %v582 = vld [vmem:[%s4 + $0x84] sm:$0xf]
  %v583 = vld [vmem:[%s4 + $0x88] sm:$0xf]
  %v584 = vld [vmem:[%s4 + $0x8c] sm:$0xf]
  %v585 = vld [vmem:[%s4 + $0x90] sm:$0xf]
  %v586 = vld [vmem:[%s4 + $0x94] sm:$0xf]
  %v587 = vld [vmem:[%s4 + $0x98] sm:$0xf]
  %v588 = vld [vmem:[%s4 + $0x9c] sm:$0xf]
  %v589 = vld [vmem:[%s4 + $0xa0] sm:$0xf]
  %v590 = vld [vmem:[%s4 + $0xa4] sm:$0xf]
  %v591 = vld [vmem:[%s4 + $0xa8] sm:$0xf]
  %v592 = vld [vmem:[%s4 + $0xac] sm:$0xf]
  %v593 = vld [vmem:[%s4 + $0xb0] sm:$0xf]
  %v594 = vld [vmem:[%s4 + $0xb4] sm:$0xf]
  %v595 = vld [vmem:[%s4 + $0xb8] sm:$0xf]
  %v596 = vld [vmem:[%s4 + $0xbc] sm:$0xf]
  %v645 = vunpack.c.l.b16 %v549
  %v646 = vunpack.c.l.b16 %v550
  %v647 = vunpack.c.l.b16 %v551
  %v648 = vunpack.c.l.b16 %v552
  %v649 = vunpack.c.l.b16 %v553
  %v650 = vunpack.c.l.b16 %v554
  %v651 = vunpack.c.l.b16 %v555
  %v652 = vunpack.c.l.b16 %v556
  %v653 = vunpack.c.l.b16 %v557
  %v654 = vunpack.c.l.b16 %v558
  %v655 = vunpack.c.l.b16 %v559
  %v656 = vunpack.c.l.b16 %v560
  %v657 = vunpack.c.l.b16 %v561
  %v658 = vunpack.c.l.b16 %v562
  %v659 = vunpack.c.l.b16 %v563
  %v660 = vunpack.c.l.b16 %v564
  %v661 = vunpack.c.l.b16 %v565
  %v662 = vunpack.c.l.b16 %v566
  %v663 = vunpack.c.l.b16 %v567
  %v664 = vunpack.c.l.b16 %v568
  %v665 = vunpack.c.l.b16 %v569
  %v666 = vunpack.c.l.b16 %v570
  %v667 = vunpack.c.l.b16 %v571
  %v668 = vunpack.c.l.b16 %v572
  %v669 = vunpack.c.l.b16 %v573
  %v670 = vunpack.c.l.b16 %v574
  %v671 = vunpack.c.l.b16 %v575
  %v672 = vunpack.c.l.b16 %v576
  %v673 = vunpack.c.l.b16 %v577
  %v674 = vunpack.c.l.b16 %v578
  %v675 = vunpack.c.l.b16 %v579
  %v676 = vunpack.c.l.b16 %v580
  %v677 = vunpack.c.l.b16 %v581
  %v678 = vunpack.c.l.b16 %v582
  %v679 = vunpack.c.l.b16 %v583
  %v680 = vunpack.c.l.b16 %v584
  %v681 = vunpack.c.l.b16 %v585
  %v682 = vunpack.c.l.b16 %v586
  %v683 = vunpack.c.l.b16 %v587
  %v684 = vunpack.c.l.b16 %v588
  %v685 = vunpack.c.l.b16 %v589
  %v686 = vunpack.c.l.b16 %v590
  %v687 = vunpack.c.l.b16 %v591
  %v688 = vunpack.c.l.b16 %v592
  %v689 = vunpack.c.l.b16 %v593
  %v690 = vunpack.c.l.b16 %v594
  %v691 = vunpack.c.l.b16 %v595
  %v692 = vunpack.c.l.b16 %v596
  %v693 = vpack.c.b16 %v646, %v645
  %v694 = vpack.c.b16 %v648, %v647
  %v695 = vpack.c.b16 %v650, %v649
  %v696 = vpack.c.b16 %v652, %v651
  %v697 = vpack.c.b16 %v654, %v653
  %v698 = vpack.c.b16 %v656, %v655
  %v699 = vpack.c.b16 %v658, %v657
  %v700 = vpack.c.b16 %v660, %v659
  %v701 = vpack.c.b16 %v662, %v661
  %v702 = vpack.c.b16 %v664, %v663
  %v703 = vpack.c.b16 %v666, %v665
  %v704 = vpack.c.b16 %v668, %v667
  %v705 = vpack.c.b16 %v670, %v669
  %v706 = vpack.c.b16 %v672, %v671
  %v707 = vpack.c.b16 %v674, %v673
  %v708 = vpack.c.b16 %v676, %v675
  %v709 = vpack.c.b16 %v678, %v677
  %v710 = vpack.c.b16 %v680, %v679
  %v711 = vpack.c.b16 %v682, %v681
  %v712 = vpack.c.b16 %v684, %v683
  %v713 = vpack.c.b16 %v686, %v685
  %v714 = vpack.c.b16 %v688, %v687
  %v715 = vpack.c.b16 %v690, %v689
  %v716 = vpack.c.b16 %v692, %v691
  %741 = vmatprep.subr.bf16.mxu0 0
  %742 = vmatpush1.bf16.msra.mxu0 %v693
  %743 = vmatprep.subr.bf16.mxu0 0
  %744 = vmatpush1.bf16.msra.mxu0 %v694
  %745 = vmatprep.subr.bf16.mxu0 0
  %746 = vmatpush1.bf16.msra.mxu0 %v695
  %747 = vmatprep.subr.bf16.mxu0 0
  %748 = vmatpush1.bf16.msra.mxu0 %v696
  %749 = vmatprep.subr.bf16.mxu0 0
  %750 = vmatpush1.bf16.msra.mxu0 %v697
  %751 = vmatprep.subr.bf16.mxu0 0
  %752 = vmatpush1.bf16.msra.mxu0 %v698
  %753 = vmatprep.subr.bf16.mxu0 0
  %754 = vmatpush1.bf16.msra.mxu0 %v699
  %755 = vmatprep.subr.bf16.mxu0 0
  %756 = vmatpush1.bf16.msra.mxu0 %v700
  %757 = vmatprep.subr.bf16.mxu0 0
  %758 = vmatpush1.bf16.msra.mxu0 %v701
  %759 = vmatprep.subr.bf16.mxu0 0
  %760 = vmatpush1.bf16.msra.mxu0 %v702
  %761 = vmatprep.subr.bf16.mxu0 0
  %762 = vmatpush1.bf16.msra.mxu0 %v703
  %763 = vmatprep.subr.bf16.mxu0 0
  %764 = vmatpush1.bf16.msra.mxu0 %v704
  %765 = vmatprep.subr.bf16.mxu0 0
  %766 = vmatpush1.bf16.msra.mxu0 %v705
  %767 = vmatprep.subr.bf16.mxu0 0
  %768 = vmatpush1.bf16.msra.mxu0 %v706
  %769 = vmatprep.subr.bf16.mxu0 0
  %770 = vmatpush1.bf16.msra.mxu0 %v707
  %771 = vmatprep.subr.bf16.mxu0 0
  %772 = vmatpush1.bf16.msra.mxu0 %v708
  %773 = vmatprep.mubr.bf16.mxu0 %v521
  %774 = vmatmul.mubr.bf16.gmra.mrb[0].mxu0 %v539
  %v775 = vpop.f32.mrb[0].mxu0
  %v776 = vadd.f32 0.0, %v775
  %v777 = vpop.f32.mrb[0].mxu0
  %v778 = vpop.f32.mrb[0].mxu0
  %v779 = vadd.f32 0.0, %v778
  %v780 = vpop.f32.mrb[0].mxu0
  %781 = vmatprep.mubr.bf16.mxu0 %v522
  %782 = vmatmul.mubr.bf16.gmra.mrb[0].mxu0 %v540
  %v783 = vpop.f32.mrb[0].mxu0
  %v784 = vadd.f32 0.0, %v783
  %v785 = vpop.f32.mrb[0].mxu0
  %v786 = vpop.f32.mrb[0].mxu0
  %v787 = vadd.f32 0.0, %v786
  %v788 = vpop.f32.mrb[0].mxu0
  %789 = vdwg.mxu0
  %790 = vmatprep.subr.bf16.mxu0 0
  %791 = vmatpush1.bf16.msra.mxu0 %v709
  %792 = vmatprep.subr.bf16.mxu0 0
  %793 = vmatpush1.bf16.msra.mxu0 %v710
  %794 = vmatprep.subr.bf16.mxu0 0
  %795 = vmatpush1.bf16.msra.mxu0 %v711
  %796 = vmatprep.subr.bf16.mxu0 0
  %797 = vmatpush1.bf16.msra.mxu0 %v712
  %798 = vmatprep.subr.bf16.mxu0 0
  %799 = vmatpush1.bf16.msra.mxu0 %v713
  %800 = vmatprep.subr.bf16.mxu0 0
  %801 = vmatpush1.bf16.msra.mxu0 %v714
  %802 = vmatprep.subr.bf16.mxu0 0
  %803 = vmatpush1.bf16.msra.mxu0 %v715
  %804 = vmatprep.subr.bf16.mxu0 0
  %805 = vmatpush1.bf16.msra.mxu0 %v716
  %806 = vmatprep.subr.bf16.mxu0 0
  %807 = vmatpush1.bf16.msra.mxu0 0
  %808 = vmatprep.subr.bf16.mxu0 0
  %809 = vmatpush1.bf16.msra.mxu0 0
  %810 = vmatprep.subr.bf16.mxu0 0
  %811 = vmatpush1.bf16.msra.mxu0 0
  %812 = vmatprep.subr.bf16.mxu0 0
  %813 = vmatpush1.bf16.msra.mxu0 0
  %814 = vmatprep.subr.bf16.mxu0 0
  %815 = vmatpush1.bf16.msra.mxu0 0
  %816 = vmatprep.subr.bf16.mxu0 0
  %817 = vmatpush1.bf16.msra.mxu0 0
  %818 = vmatprep.subr.bf16.mxu0 0
  %819 = vmatpush1.bf16.msra.mxu0 0
  %820 = vmatprep.subr.bf16.mxu0 0
  %821 = vmatpush1.bf16.msra.mxu0 0
  %822 = vmatprep.mubr.bf16.mxu0 0
  %823 = vmatmul.mubr.bf16.gmra.mrb[0].mxu0 %v547
  %v824 = vpop.f32.mrb[0].mxu0
  %v825 = vadd.f32 %v776, %v824
  %v826 = vpop.f32.mrb[0].mxu0
  %v827 = vpop.f32.mrb[0].mxu0
  %v828 = vadd.f32 %v779, %v827
  %v829 = vpop.f32.mrb[0].mxu0
  %830 = vmatprep.mubr.bf16.mxu0 0
  %831 = vmatmul.mubr.bf16.gmra.mrb[0].mxu0 %v548
  %v832 = vpop.f32.mrb[0].mxu0
  %v833 = vadd.f32 %v784, %v832
  %v834 = vpop.f32.mrb[0].mxu0
  %v835 = vpop.f32.mrb[0].mxu0
  %v836 = vadd.f32 %v787, %v835
  %v837 = vpop.f32.mrb[0].mxu0
  %838 = vdwg.mxu0
  %v839 = vld [vmem:[%s5] sm:$0x1]
  %v841 = vlaneseq
  %v842 = vshrl.u32 %v841, 7
  %v843 = vsub.s32 0, %v842
  %v844 = vrot.slane %v839, %v843
  %v846 = vmul.f32 %v825, %v844
  %v847 = vmul.f32 %v828, %v844
  %v848 = vmul.f32 %v833, %v844
  %v849 = vmul.f32 %v836, %v844
  %v850 = vld [vmem:[%s6] sm:$0x1]
  %v852 = vlaneseq
  %v853 = vshrl.u32 %v852, 7
  %v854 = vsub.s32 0, %v853
  %v855 = vrot.slane %v850, %v854
  %v857 = vadd.f32 %v846, %v855
  %v858 = vadd.f32 %v847, %v855
  %v859 = vadd.f32 %v848, %v855
  %v860 = vadd.f32 %v849, %v855
  %v861 = vadd.f32 %v857, %v502
  %v862 = vadd.f32 %v858, %v504
  %v863 = vadd.f32 %v859, %v506
  %v864 = vadd.f32 %v860, %v508
  %vm865 = vcmp.gt.f32.partialorder %v861, 0.0
  %vm866 = vcmp.gt.f32.partialorder %v862, 0.0
  %vm867 = vcmp.gt.f32.partialorder %v863, 0.0
  %vm868 = vcmp.gt.f32.partialorder %v864, 0.0
  %v869 = vmul.f32 %v861, 0.1
  %v870 = vmul.f32 %v862, 0.1
  %v871 = vmul.f32 %v863, 0.1
  %v872 = vmul.f32 %v864, 0.1
  %v873 = vsel %vm865, %v861, %v869
  %v874 = vsel %vm866, %v862, %v870
  %v875 = vsel %vm867, %v863, %v871
  %v876 = vsel %vm868, %v864, %v872
  %877 = vst [vmem:[%s7] sm:$0xff] %v873
  %878 = vst [vmem:[%s7 + $0x8] sm:$0xff] %v874
  %879 = vst [vmem:[%s7 + $0x10] sm:$0xff] %v875
  %880 = vst [vmem:[%s7 + $0x18] sm:$0xff] %v876
  // Predicated region
  $region30: #{residual_block_forward.1} parent=0 // pred_check
    _
  $region31: #{residual_block_forward.1} parent=0 // pred_check_branch
    %882 = sbr.rel (0) target = $region33
  $region32: #{residual_block_forward.1} parent=0 // pred_region
    _
  $region33: #{residual_block_forward.1} parent=0 // pred_fallthru
    _
  // Predicated region
  $region34: #{residual_block_forward.1} parent=0 // pred_check
    _
  $region35: #{residual_block_forward.1} parent=0 // pred_check_branch
    %884 = sbr.rel (0) target = $region37
  $region36: #{residual_block_forward.1} parent=0 // pred_region
    _
  $region37: #{residual_block_forward.1} parent=0 // pred_fallthru
    _

</llo_original>
